<compile_context>
chip_gen: v7x
topology: tpu7x:2x2x1
jax: 0.10.0
libtpu: 0.0.40
codegen_flags: <defaults>
</compile_context>

<pallas_src>
import functools

import jax
import jax.numpy as jnp
from jax.experimental import pallas as pl
from jax.experimental.pallas import tpu as pltpu


def _round_up(x, m):
    return ((x + m - 1) // m) * m


def _vmem_budget_bytes():
    """~75% of physical VMEM (96 MiB on v5e/v6e, 48 MiB on v7x), capped at 100 MiB."""
    try:
        cap = int(pltpu.get_tpu_info().vmem_capacity_bytes)
    except Exception:
        cap = 64 * 1024 * 1024            # conservative default (v7x physical VMEM)
    return min((cap * 3) // 4, 100 * 1024 * 1024)


def _step_vmem_bytes(tb, c, thw, ppad, in_itemsize):
    inp = 2 * tb * c * thw * in_itemsize          # double-buffered input block
    proto = 2 * tb * ppad * thw * 4               # double-buffered proto block
    weights = 2 * (ppad * c * in_itemsize + ppad * 4)
    resident = 2 * 2 * tb * ppad * 4              # pooled + idx output accumulators
    temps = 4 * ppad * thw * 4                    # z / e / pf / mask temporaries
    return inp + proto + weights + resident + temps


def _choose_tiling(batch, c, hwpad, ppad, in_itemsize, budget, max_tb=8):
    """VMEM-aware (TB, THW); keeps >= 2 steps on the parallel batch axis (megacore)."""
    tb_cands = [t for t in range(min(batch, max_tb), 0, -1) if batch % t == 0]
    if batch >= 2:
        tb_cands = [t for t in tb_cands if batch // t >= 2] or [1]
    thw_cands = [t for t in range(hwpad, 0, -128) if hwpad % t == 0]
    for thw in thw_cands:                         # prefer the full spatial extent
        for tb in tb_cands:
            if _step_vmem_bytes(tb, c, thw, ppad, in_itemsize) <= budget:
                return tb, thw
    return 1, 128


def pipnet_kernel(x_ref, w_add_ref, b_add_ref, proto_ref, pooled_ref, idx_ref,
                  *, hw_valid, inference):
    tb, _, thw = x_ref.shape
    h = pl.program_id(1)

    # Init the resident pooled / argmax accumulators on the first spatial tile.
    @pl.when(h == 0)
    def _():
        pooled_ref[...] = jnp.full(pooled_ref.shape, -1.0, dtype=pooled_ref.dtype)
        idx_ref[...] = jnp.zeros(idx_ref.shape, dtype=idx_ref.dtype)

    w = w_add_ref[...]                            # [Ppad, C]  (bf16)
    bias = b_add_ref[...]                         # [Ppad, 1]  (f32; padded rows -1e30)
    col = jax.lax.broadcasted_iota(jnp.int32, (1, thw), 1) + h * thw   # global column
    valid = col < hw_valid                        # [1, THW]

    max_rows, idx_rows = [], []
    for b in range(tb):
        # add-on 1x1 conv: [Ppad, C] @ [C, THW] on the MXU, f32 accumulation.
        z = jnp.dot(w, x_ref[b], preferred_element_type=jnp.float32) + bias
        # Channel softmax over the prototype (sublane) axis.
        z = z - jnp.max(z, axis=0, keepdims=True)
        e = jnp.exp(z)
        pf = e * pl.reciprocal(jnp.sum(e, axis=0, keepdims=True), approx=True)
        if inference:                             # static flag (PyTorch inference=True)
            pf = jnp.where(pf < 0.1, 0.0, pf)
        proto_ref[b] = pf                         # natural layout, lane-dense store

        # Global max-pool + first-argmax over the spatial (lane) axis.
        pf_m = jnp.where(valid, pf, -1.0)         # mask padded spatial columns
        row_max = jnp.max(pf_m, axis=1, keepdims=True)            # [Ppad, 1]
        row_idx = jnp.min(jnp.where(pf_m == row_max, col, 2 ** 30),
                          axis=1, keepdims=True)                  # [Ppad, 1]
        max_rows.append(row_max[None])            # [1, Ppad, 1]
        idx_rows.append(row_idx[None])

    tile_max = jnp.concatenate(max_rows, axis=0)                  # [TB, Ppad, 1]
    tile_idx = jnp.concatenate(idx_rows, axis=0).astype(jnp.int32)
    prev_max = pooled_ref[...]
    prev_idx = idx_ref[...]
    better = tile_max > prev_max                  # strict '>' keeps first spatial index
    pooled_ref[...] = jnp.where(better, tile_max, prev_max)
    idx_ref[...] = jnp.where(better, tile_idx, prev_idx)


def pipnet_forward(features_nchw, w_add, b_add, w_cls, b_cls, *,
                   inference=False, matmul_dtype=jnp.bfloat16):
    """PIPNet classification forward (task='classification').

    features_nchw : [B, C, H, W]   backbone output (NCHW, like PyTorch)
    w_add         : [P, C, 1, 1]   add-on 1x1 conv weight
    b_add         : [P]            add-on 1x1 conv bias
    w_cls         : [NC, P]        NonNegLinear weight
    b_cls         : [NC]           NonNegLinear bias
    returns (proto_features, proto_features, (pooled, pooled_idxs), None, out)
    """
    B, C, H, W = features_nchw.shape
    HW = H * W
    P = w_add.shape[0]
    Ppad = _round_up(P, 128)
    HWpad = _round_up(HW, 128)
    in_itemsize = jnp.dtype(matmul_dtype).itemsize

    # NCHW input stays channel-major: free reshape + lane padding + bf16 cast only.
    x = features_nchw.reshape(B, C, HW)
    if HWpad != HW:
        x = jnp.pad(x, ((0, 0), (0, 0), (0, HWpad - HW)))
    x = x.astype(matmul_dtype)

    # 1x1 conv weight as [Ppad, C] (no transpose needed in the kernel layout);
    # padded prototype rows get zero weights and a -1e30 bias so the channel
    # softmax assigns them exactly zero probability.
    w_add_p = jnp.pad(w_add.reshape(P, C), ((0, Ppad - P), (0, 0))).astype(matmul_dtype)
    b_add_p = jnp.pad(b_add.astype(jnp.float32), (0, Ppad - P),
                      constant_values=-1e30).reshape(Ppad, 1)

    budget = _vmem_budget_bytes()
    TB, THW = _choose_tiling(B, C, HWpad, Ppad, in_itemsize, budget)
    grid = (B // TB, HWpad // THW)

    kernel = functools.partial(pipnet_kernel, hw_valid=HW, inference=bool(inference))

    proto, pooled, idxs = pl.pallas_call(
        kernel,
        out_shape=(
            jax.ShapeDtypeStruct((B, Ppad, HWpad), jnp.float32),   # proto (padded NCHW)
            jax.ShapeDtypeStruct((B, Ppad, 1), jnp.float32),       # pooled max
            jax.ShapeDtypeStruct((B, Ppad, 1), jnp.int32),         # first-argmax index
        ),
        grid_spec=pltpu.PrefetchScalarGridSpec(
            num_scalar_prefetch=0,
            grid=grid,
            in_specs=[
                pl.BlockSpec((TB, C, THW), lambda b, h: (b, 0, h)),
                # TODO(synk): pipeline_mode=pl.Buffered(1) for these
                # grid-invariant operands to reclaim VMEM on v7x.
                pl.BlockSpec((Ppad, C), lambda b, h: (0, 0)),
                pl.BlockSpec((Ppad, 1), lambda b, h: (0, 0)),
            ],
            out_specs=[
                pl.BlockSpec((TB, Ppad, THW), lambda b, h: (b, 0, h)),
                pl.BlockSpec((TB, Ppad, 1), lambda b, h: (b, 0, 0)),
                pl.BlockSpec((TB, Ppad, 1), lambda b, h: (b, 0, 0)),
            ],
        ),
        compiler_params=pltpu.CompilerParams(
            dimension_semantics=("parallel", "arbitrary"),
            vmem_limit_bytes=budget,
        ),
    )(x, w_add_p, b_add_p)

    # Only free reshapes + small slices of the padded regions here.
    proto_features = proto[:, :P, :HW].reshape(B, P, H, W)
    pooled_out = pooled.reshape(B, Ppad)[:, :P]
    pooled_idxs = idxs.reshape(B, Ppad)[:, :P]     # flattened h*W + w, like PyTorch

    # NonNegLinear classifier hoisted to XLA: an M = B (<=8)-row matmul is a
    # badly shaped MXU op in-kernel and its operands would be double-buffered.
    out = pooled_out @ jnp.maximum(w_cls, 0.0).T + b_cls[None, :]
    return proto_features, proto_features, (pooled_out, pooled_idxs), None, out


def _reference(features_nchw, w_add, b_add, w_cls, b_cls, matmul_dtype=jnp.bfloat16):
    B, C, H, W = features_nchw.shape
    P = w_add.shape[0]
    f = features_nchw.astype(matmul_dtype)
    wa = w_add.reshape(P, C).astype(matmul_dtype)
    z = jnp.einsum('bchw,pc->bphw', f, wa, preferred_element_type=jnp.float32) \
        + b_add[None, :, None, None]
    pf = jax.nn.softmax(z, axis=1)
    flat = pf.reshape(B, P, H * W)
    pooled = jnp.max(flat, axis=-1)
    idxs = jnp.argmax(flat, axis=-1).astype(jnp.int32)
    out = pooled @ jnp.maximum(w_cls, 0.0).T + b_cls[None, :]
    return pf, pooled, idxs, out


if __name__ == "__main__":
    # small shapes: batch=2, backbone channels=32, spatial=8x8,
    # num_prototypes (args.num_features)=16, num_classes=4
    B, C, H, W = 2, 32, 8, 8
    P, NC = 16, 4

    key = jax.random.PRNGKey(0)
    k1, k2, k3, k4, k5 = jax.random.split(key, 5)
    features = jax.random.normal(k1, (B, C, H, W), dtype=jnp.float32)
    w_add = jax.random.normal(k2, (P, C, 1, 1), dtype=jnp.float32) * 0.1
    b_add = jax.random.normal(k3, (P,), dtype=jnp.float32) * 0.1
    w_cls = jax.random.normal(k4, (NC, P), dtype=jnp.float32) * 0.5
    b_cls = jax.random.normal(k5, (NC,), dtype=jnp.float32) * 0.1

    proto, proto2, (pooled, pooled_idxs), _none, out = jax.block_until_ready(
        pipnet_forward(features, w_add, b_add, w_cls, b_cls))

    pf_ref, pooled_ref, idxs_ref, out_ref = _reference(
        features, w_add, b_add, w_cls, b_cls)

    assert proto.shape == (B, P, H, W)
    assert pooled.shape == (B, P) and pooled_idxs.shape == (B, P)
    assert out.shape == (B, NC)
    assert _none is None

    # proto / pooled vs reference (approx-reciprocal softmax => loosened tol).
    assert jnp.allclose(proto, pf_ref, atol=5e-3, rtol=5e-3)
    assert jnp.allclose(pooled, pooled_ref, atol=5e-3, rtol=5e-3)

    # Kernel self-consistency: gathering proto at the returned indices must
    # reproduce the pooled maxima (same f32 values), and indices are in range.
    gathered = jnp.take_along_axis(proto.reshape(B, P, H * W),
                                   pooled_idxs[..., None], axis=-1)[..., 0]
    assert jnp.allclose(gathered, pooled, atol=1e-6)
    assert bool(jnp.all((pooled_idxs >= 0) & (pooled_idxs < H * W)))

    # Argmax vs reference, tie-aware: the reference value at the kernel's index
    # must equal the reference maximum (indices may differ only on near-ties).
    ref_at_idx = jnp.take_along_axis(pf_ref.reshape(B, P, H * W),
                                     pooled_idxs[..., None], axis=-1)[..., 0]
    assert jnp.allclose(ref_at_idx, pooled_ref, atol=1e-2, rtol=1e-2)

    assert jnp.allclose(out, out_ref, atol=2e-2, rtol=1e-2)

    print("KERNEL_OK")
</pallas_src>

<mosaic_0001>
module attributes {stable_mosaic.version = 11 : i64} {
  func.func @pipnet_kernel(%arg0: i32, %arg1: i32, %arg2: memref<1x32x128xbf16, #tpu.memory_space<vmem>>, %arg3: memref<128x32xbf16, #tpu.memory_space<vmem>>, %arg4: memref<128x1xf32, #tpu.memory_space<vmem>>, %arg5: memref<1x128x128xf32, #tpu.memory_space<vmem>>, %arg6: memref<1x128x1xf32, #tpu.memory_space<vmem>>, %arg7: memref<1x128x1xi32, #tpu.memory_space<vmem>>) attributes {dimension_semantics = [#tpu.dimension_semantics<parallel>, #tpu.dimension_semantics<arbitrary>], iteration_bounds = array<i64: 2, 1>, scalar_prefetch = 0 : i64, scratch_operands = 0 : i64, tpu.core_type = #tpu.core_type<tc>, window_params = [{transform_indices = @transform_0, window_bounds = array<i64: 1, 32, 128>}, {pipeline_mode = #tpu.pipeline_mode<synchronous>, transform_indices = @transform_1, window_bounds = array<i64: 128, 32>}, {pipeline_mode = #tpu.pipeline_mode<synchronous>, transform_indices = @transform_2, window_bounds = array<i64: 128, 1>}, {transform_indices = @transform_3, window_bounds = array<i64: 1, 128, 128>}, {transform_indices = @transform_4, window_bounds = array<i64: 1, 128, 1>}, {transform_indices = @transform_5, window_bounds = array<i64: 1, 128, 1>}]} {
    %c0_i32 = arith.constant 0 : i32
    %0 = arith.cmpi eq, %arg1, %c0_i32 : i32
    %1 = arith.extui %0 : i1 to i32
    %c0_i32_0 = arith.constant 0 : i32
    %2 = arith.cmpi ne, %1, %c0_i32_0 : i32
    scf.if %2 {
      %cst_27 = arith.constant -1.000000e+00 : f32
      %52 = vector.broadcast %cst_27 : f32 to vector<1x128x1xf32>
      %c0_28 = arith.constant 0 : index
      %c0_29 = arith.constant 0 : index
      %c0_30 = arith.constant 0 : index
      %53 = vector.load %arg6[%c0_28, %c0_29, %c0_30] : memref<1x128x1xf32, #tpu.memory_space<vmem>>, vector<1x128x1xf32>
      tpu.vector_store %arg6[%c0_28, %c0_29, %c0_30], %52 {strides = array<i32>} : memref<1x128x1xf32, #tpu.memory_space<vmem>>, vector<1x128x1xf32>,
      %c0_i32_31 = arith.constant 0 : i32
      %54 = vector.broadcast %c0_i32_31 : i32 to vector<1x128x1xi32>
      %c0_32 = arith.constant 0 : index
      %c0_33 = arith.constant 0 : index
      %c0_34 = arith.constant 0 : index
      %55 = vector.load %arg7[%c0_32, %c0_33, %c0_34] : memref<1x128x1xi32, #tpu.memory_space<vmem>>, vector<1x128x1xi32>
      tpu.vector_store %arg7[%c0_32, %c0_33, %c0_34], %54 {strides = array<i32>} : memref<1x128x1xi32, #tpu.memory_space<vmem>>, vector<1x128x1xi32>,
    } else {
    }
    %c0 = arith.constant 0 : index
    %c0_1 = arith.constant 0 : index
    %3 = vector.load %arg3[%c0, %c0_1] : memref<128x32xbf16, #tpu.memory_space<vmem>>, vector<128x32xbf16>
    %c0_2 = arith.constant 0 : index
    %c0_3 = arith.constant 0 : index
    %4 = vector.load %arg4[%c0_2, %c0_3] : memref<128x1xf32, #tpu.memory_space<vmem>>, vector<128x1xf32>
    %5 = tpu.iota {dimensions = array<i32: 1>} : vector<1x128xi32>
    %c128_i32 = arith.constant 128 : i32
    %6 = arith.muli %arg1, %c128_i32 : i32
    %7 = vector.broadcast %6 : i32 to vector<1x128xi32>
    %8 = arith.addi %5, %7 : vector<1x128xi32>
    %c64_i32 = arith.constant 64 : i32
    %9 = vector.broadcast %c64_i32 : i32 to vector<1x128xi32>
    %10 = arith.cmpi slt, %8, %9 : vector<1x128xi32>
    %c0_4 = arith.constant 0 : index
    %c0_5 = arith.constant 0 : index
    %c0_6 = arith.constant 0 : index
    %11 = vector.load %arg2[%c0_4, %c0_5, %c0_6] : memref<1x32x128xbf16, #tpu.memory_space<vmem>>, vector<1x32x128xbf16>
    %12 = vector.shape_cast %11 : vector<1x32x128xbf16> to vector<32x128xbf16>
    %cst = arith.constant dense<0.000000e+00> : vector<128x128xf32>
    %13 = tpu.matmul %3, %12, %cst {dimension_numbers = #tpu.dot_dimension_numbers<[1], [0], [0], [1], [0, 0, 1, 1], [], []>} : vector<128x32xbf16>, vector<32x128xbf16>, vector<128x128xf32> -> vector<128x128xf32>
    %14 = vector.broadcast %4 : vector<128x1xf32> to vector<128x128xf32>
    %15 = arith.addf %13, %14 : vector<128x128xf32>
    %cst_7 = arith.constant dense<0xFF800000> : vector<128xf32>
    %16 = vector.multi_reduction <maximumf>, %15, %cst_7 [0] : vector<128x128xf32> to vector<128xf32>
    %17 = vector.shape_cast %16 : vector<128xf32> to vector<1x128xf32>
    %18 = vector.broadcast %17 : vector<1x128xf32> to vector<128x128xf32>
    %19 = arith.subf %15, %18 : vector<128x128xf32>
    %20 = math.exp %19 : vector<128x128xf32>
    %cst_8 = arith.constant dense<0.000000e+00> : vector<128xf32>
    %21 = vector.multi_reduction <add>, %20, %cst_8 [0] : vector<128x128xf32> to vector<128xf32>
    %22 = vector.shape_cast %21 : vector<128xf32> to vector<1x128xf32>
    %23 = tpu.reciprocal %22 {approx = true} : vector<1x128xf32> -> vector<1x128xf32>
    %24 = vector.broadcast %23 : vector<1x128xf32> to vector<128x128xf32>
    %25 = arith.mulf %20, %24 : vector<128x128xf32>
    %c0_9 = arith.constant 0 : index
    %c0_10 = arith.constant 0 : index
    %c0_11 = arith.constant 0 : index
    %26 = vector.load %arg5[%c0_9, %c0_10, %c0_11] : memref<1x128x128xf32, #tpu.memory_space<vmem>>, vector<1x128x128xf32>
    %27 = vector.shape_cast %26 : vector<1x128x128xf32> to vector<128x128xf32>
    %28 = vector.shape_cast %25 : vector<128x128xf32> to vector<1x128x128xf32>
    tpu.vector_store %arg5[%c0_9, %c0_10, %c0_11], %28 {strides = array<i32>} : memref<1x128x128xf32, #tpu.memory_space<vmem>>, vector<1x128x128xf32>,
    %cst_12 = arith.constant -1.000000e+00 : f32
    %29 = vector.shape_cast %10 : vector<1x128xi1> to vector<1x128xi1>
    %30 = vector.broadcast %29 : vector<1x128xi1> to vector<128x128xi1>
    %31 = vector.broadcast %cst_12 : f32 to vector<128x128xf32>
    %32 = arith.select %30, %25, %31 : vector<128x128xi1>, vector<128x128xf32>
    %cst_13 = arith.constant dense<0xFF800000> : vector<128xf32>
    %33 = vector.multi_reduction <maximumf>, %32, %cst_13 [1] : vector<128x128xf32> to vector<128xf32>
    %34 = vector.shape_cast %33 : vector<128xf32> to vector<128x1xf32>
    %35 = vector.broadcast %34 : vector<128x1xf32> to vector<128x128xf32>
    %36 = arith.cmpf oeq, %32, %35 : vector<128x128xf32>
    %c1073741824_i32 = arith.constant 1073741824 : i32
    %37 = vector.shape_cast %8 : vector<1x128xi32> to vector<1x128xi32>
    %38 = vector.broadcast %37 : vector<1x128xi32> to vector<128x128xi32>
    %39 = vector.broadcast %c1073741824_i32 : i32 to vector<128x128xi32>
    %40 = arith.select %36, %38, %39 : vector<128x128xi1>, vector<128x128xi32>
    %cst_14 = arith.constant dense<2147483647> : vector<128xi32>
    %41 = vector.multi_reduction <minsi>, %40, %cst_14 [1] : vector<128x128xi32> to vector<128xi32>
    %42 = vector.shape_cast %41 : vector<128xi32> to vector<128x1xi32>
    %43 = vector.shape_cast %34 : vector<128x1xf32> to vector<1x128x1xf32>
    %44 = vector.shape_cast %42 : vector<128x1xi32> to vector<1x128x1xi32>
    %c0_15 = arith.constant 0 : index
    %c0_16 = arith.constant 0 : index
    %c0_17 = arith.constant 0 : index
    %45 = vector.load %arg6[%c0_15, %c0_16, %c0_17] : memref<1x128x1xf32, #tpu.memory_space<vmem>>, vector<1x128x1xf32>
    %c0_18 = arith.constant 0 : index
    %c0_19 = arith.constant 0 : index
    %c0_20 = arith.constant 0 : index
    %46 = vector.load %arg7[%c0_18, %c0_19, %c0_20] : memref<1x128x1xi32, #tpu.memory_space<vmem>>, vector<1x128x1xi32>
    %47 = arith.cmpf ogt, %43, %45 : vector<1x128x1xf32>
    %48 = arith.select %47, %43, %45 : vector<1x128x1xi1>, vector<1x128x1xf32>
    %c0_21 = arith.constant 0 : index
    %c0_22 = arith.constant 0 : index
    %c0_23 = arith.constant 0 : index
    %49 = vector.load %arg6[%c0_21, %c0_22, %c0_23] : memref<1x128x1xf32, #tpu.memory_space<vmem>>, vector<1x128x1xf32>
    tpu.vector_store %arg6[%c0_21, %c0_22, %c0_23], %48 {strides = array<i32>} : memref<1x128x1xf32, #tpu.memory_space<vmem>>, vector<1x128x1xf32>,
    %50 = arith.select %47, %44, %46 : vector<1x128x1xi1>, vector<1x128x1xi32>
    %c0_24 = arith.constant 0 : index
    %c0_25 = arith.constant 0 : index
    %c0_26 = arith.constant 0 : index
    %51 = vector.load %arg7[%c0_24, %c0_25, %c0_26] : memref<1x128x1xi32, #tpu.memory_space<vmem>>, vector<1x128x1xi32>
    tpu.vector_store %arg7[%c0_24, %c0_25, %c0_26], %50 {strides = array<i32>} : memref<1x128x1xi32, #tpu.memory_space<vmem>>, vector<1x128x1xi32>,
    return
  }
  func.func @transform_0(%arg0: i32, %arg1: i32) -> (i32, i32, i32) {
    %c0_i32 = arith.constant 0 : i32
    %c0_i32_0 = arith.constant 0 : i32
    return %arg0, %c0_i32, %arg1 : i32, i32, i32
  }
  func.func @transform_1(%arg0: i32, %arg1: i32) -> (i32, i32) {
    %c0_i32 = arith.constant 0 : i32
    %c0_i32_0 = arith.constant 0 : i32
    %c0_i32_1 = arith.constant 0 : i32
    return %c0_i32, %c0_i32_0 : i32, i32
  }
  func.func @transform_2(%arg0: i32, %arg1: i32) -> (i32, i32) {
    %c0_i32 = arith.constant 0 : i32
    %c0_i32_0 = arith.constant 0 : i32
    %c0_i32_1 = arith.constant 0 : i32
    return %c0_i32, %c0_i32_0 : i32, i32
  }
  func.func @transform_3(%arg0: i32, %arg1: i32) -> (i32, i32, i32) {
    %c0_i32 = arith.constant 0 : i32
    %c0_i32_0 = arith.constant 0 : i32
    return %arg0, %c0_i32, %arg1 : i32, i32, i32
  }
  func.func @transform_4(%arg0: i32, %arg1: i32) -> (i32, i32, i32) {
    %c0_i32 = arith.constant 0 : i32
    %c0_i32_0 = arith.constant 0 : i32
    %c0_i32_1 = arith.constant 0 : i32
    return %arg0, %c0_i32, %c0_i32_0 : i32, i32, i32
  }
  func.func @transform_5(%arg0: i32, %arg1: i32) -> (i32, i32, i32) {
    %c0_i32 = arith.constant 0 : i32
    %c0_i32_0 = arith.constant 0 : i32
    %c0_i32_1 = arith.constant 0 : i32
    return %arg0, %c0_i32, %c0_i32_0 : i32, i32, i32
  }
}

</mosaic_0001>

<llo_original>
// kernel: tpu_custom_call.1
$region0: #{tpu_custom_call.1}
  #allocation0 [shape = 'u32[]', space=smem, size = 0x4, offset = 0x4, fixed_abs, tag = 'smem constant byte address 0x4 - core index']
  #allocation1 [shape = 'u32[144,128]{1,0:T(1,128)}', space=vmem, size = 0x12000, scoped, tag = 'internal scratch']
  %s0 = inlined_call_operand.vmem [shape: bf16[2,32,128], index: 0, kind: input, shape index: {}]
  %s1 = inlined_call_operand.vmem [shape: bf16[128,32], index: 1, kind: input, shape index: {}]
  %s2 = inlined_call_operand.vmem [shape: f32[128,1], index: 2, kind: input, shape index: {}]
  %s3 = inlined_call_operand.hbm [shape: f32[2,128,128], index: 3, kind: output, shape index: {0}]
  %s4 = inlined_call_operand.vmem [shape: f32[2,128,1], index: 4, kind: output, shape index: {1}]
  %s5 = inlined_call_operand.vmem [shape: s32[2,128,1], index: 5, kind: output, shape index: {2}]
  %6 = xla_tuple %s3, %s4, %s5
  %s7 = sld [smem:[#allocation0]]
  $region65: #{tpu_custom_call.1} parent=0
    _
  %s9 = ssub.s32 1, %s7
  %s10 = scalar_select 0, %s9, %s7
  $region1: #{tpu_custom_call.1} parent=0
    #allocation2 [shape = 'u8[131072]{0}', space=vmem, size = 0x20000, scoped, tag = 'output window, operand 0']
    #allocation3 [shape = 's32[2]{0}', space=sflag, size = 0x8, scoped, tag = 'scoped memory for tpu_custom_call.1']
    %11 = vsyncpa [#allocation3], 0
    %s12 = scalar_lea.sflag [#allocation3], 1
    %13 = vsyncpa %s12, 0
    loop: start=0, step=1, limit=4
    $region2: #{tpu_custom_call.1} parent=1 // loop_pre_header
      _
    $region3: #{tpu_custom_call.1} parent=1 // loop_header
      %s15 = sphi 0, %s19
      %p16 = scmp.ge.s32.totalorder %s15, 4
      %s22 = sphi 0, %s34
      %s23 = sphi 0, %s30
      %s24 = sphi 0, %s22
      %s25 = sphi 0, %s23
      %s26 = sphi 0, %s24
      %s27 = sphi 0, %s25
      %s39 = sphi 0, %s41
      %s42 = sphi 0, %s39
      %s43 = sphi 0, %s42
      %s59 = sphi 0, %s43
      %s63 = sphi 0, %s63
      %s65 = sphi 0, %s63
      %s66 = sphi 0, %s65
      %s80 = sphi 0, %s66
      %s84 = sphi 0, %s84
      %s86 = sphi 0, %s84
      %s87 = sphi 0, %s86
      %s101 = sphi 0, %s87
      %s109 = sphi 0, %s111
      %s112 = sphi 0, %s109
      %s113 = sphi 0, %s112
      %s129 = sphi 0, %s113
      %s135 = sphi 0, %s137
      %s138 = sphi 0, %s135
      %s139 = sphi 0, %s138
      %s155 = sphi 0, %s139
      %s161 = sphi 0, %s163
      %s164 = sphi 0, %s161
      %s165 = sphi 0, %s164
      %s181 = sphi 0, %s165
    $region4: #{tpu_custom_call.1} parent=1 // loop_header_branch
      %18 = sbr.rel (%p16) target = $region8
    $region5: #{tpu_custom_call.1} parent=1 // loop_body
      %s20 = ssub.s32 %s15, 1
      %s21 = ssub.s32 %s15, 2
      %s28 = sadd.s32 1, %s23
      %p29 = scmp.ge.s32.totalorder %s28, 1
      %s30 = scalar_select %p29, 0, %s28
      %s31 = sadd.s32 1, %s22
      %s32 = scalar_select %p29, %s31, %s22
      %p33 = scmp.ge.s32.totalorder %s32, 2
      %s34 = scalar_select %p33, 0, %s32
      %s35 = ssub.s32 %s22, %s34
      %s36 = ssub.s32 %s23, %s30
      %s37 = sor.u32 %s35, %s36
      %p38 = scmp.eq.s32.totalorder %s37, 0
      %s40 = sadd.s32 %s39, 1
      %s41 = scalar_select %p38, %s39, %s40
      %p44 = pneg %p38
      %p45 = scmp.eq.s32.totalorder %s15, 1
      %p46 = por %p44, %p45
      %p47 = scmp.ne.s32.totalorder %s39, %s42
      %p48 = scmp.eq.s32.totalorder %s15, 0
      %p49 = por %p47, %p48
      %p50 = scmp.ne.s32.totalorder %s39, %s42
      %p51 = scmp.eq.s32.totalorder %s20, 1
      %p52 = por %p50, %p51
      %p53 = scmp.ne.s32.totalorder %s42, %s43
      %p54 = scmp.eq.s32.totalorder %s20, 0
      %p55 = por %p53, %p54
      %p56 = scmp.ne.s32.totalorder %s42, %s43
      %p57 = scmp.eq.s32.totalorder %s21, 1
      %p58 = por %p56, %p57
      %p60 = scmp.ne.s32.totalorder %s43, %s59
      %p61 = scmp.eq.s32.totalorder %s21, 0
      %p62 = por %p60, %p61
      %s64 = sadd.s32 %s63, 1
      %p67 = scmp.eq.s32.totalorder %s15, 1
      %p68 = scmp.ne.s32.totalorder %s63, %s65
      %p69 = scmp.eq.s32.totalorder %s15, 0
      %p70 = por %p68, %p69
      %p71 = scmp.ne.s32.totalorder %s63, %s65
      %p72 = scmp.eq.s32.totalorder %s20, 1
      %p73 = por %p71, %p72
      %p74 = scmp.ne.s32.totalorder %s65, %s66
      %p75 = scmp.eq.s32.totalorder %s20, 0
      %p76 = por %p74, %p75
      %p77 = scmp.ne.s32.totalorder %s65, %s66
      %p78 = scmp.eq.s32.totalorder %s21, 1
      %p79 = por %p77, %p78
      %p81 = scmp.ne.s32.totalorder %s66, %s80
      %p82 = scmp.eq.s32.totalorder %s21, 0
      %p83 = por %p81, %p82
      %s85 = sadd.s32 %s84, 1
      %p88 = scmp.eq.s32.totalorder %s15, 1
      %p89 = scmp.ne.s32.totalorder %s84, %s86
      %p90 = scmp.eq.s32.totalorder %s15, 0
      %p91 = por %p89, %p90
      %p92 = scmp.ne.s32.totalorder %s84, %s86
      %p93 = scmp.eq.s32.totalorder %s20, 1
      %p94 = por %p92, %p93
      %p95 = scmp.ne.s32.totalorder %s86, %s87
      %p96 = scmp.eq.s32.totalorder %s20, 0
      %p97 = por %p95, %p96
      %p98 = scmp.ne.s32.totalorder %s86, %s87
      %p99 = scmp.eq.s32.totalorder %s21, 1
      %p100 = por %p98, %p99
      %p102 = scmp.ne.s32.totalorder %s87, %s101
      %p103 = scmp.eq.s32.totalorder %s21, 0
      %p104 = por %p102, %p103
      %s105 = ssub.s32 %s22, %s34
      %s106 = ssub.s32 %s23, %s30
      %s107 = sor.u32 %s105, %s106
      %p108 = scmp.eq.s32.totalorder %s107, 0
      %s110 = sadd.s32 %s109, 1
      %s111 = scalar_select %p108, %s109, %s110
      %p114 = pneg %p108
      %p115 = scmp.eq.s32.totalorder %s15, 1
      %p116 = por %p114, %p115
      %p117 = scmp.ne.s32.totalorder %s109, %s112
      %p118 = scmp.eq.s32.totalorder %s15, 0
      %p119 = por %p117, %p118
      %p120 = scmp.ne.s32.totalorder %s109, %s112
      %p121 = scmp.eq.s32.totalorder %s20, 1
      %p122 = por %p120, %p121
      %p123 = scmp.ne.s32.totalorder %s112, %s113
      %p124 = scmp.eq.s32.totalorder %s20, 0
      %p125 = por %p123, %p124
      %p126 = scmp.ne.s32.totalorder %s112, %s113
      %p127 = scmp.eq.s32.totalorder %s21, 1
      %p128 = por %p126, %p127
      %p130 = scmp.ne.s32.totalorder %s113, %s129
      %p131 = scmp.eq.s32.totalorder %s21, 0
      %p132 = por %p130, %p131
      %s133 = ssub.s32 %s22, %s34
      %p134 = scmp.eq.s32.totalorder %s133, 0
      %s136 = sadd.s32 %s135, 1
      %s137 = scalar_select %p134, %s135, %s136
      %p140 = pneg %p134
      %p141 = scmp.eq.s32.totalorder %s15, 1
      %p142 = por %p140, %p141
      %p143 = scmp.ne.s32.totalorder %s135, %s138
      %p144 = scmp.eq.s32.totalorder %s15, 0
      %p145 = por %p143, %p144
      %p146 = scmp.ne.s32.totalorder %s135, %s138
      %p147 = scmp.eq.s32.totalorder %s20, 1
      %p148 = por %p146, %p147
      %p149 = scmp.ne.s32.totalorder %s138, %s139
      %p150 = scmp.eq.s32.totalorder %s20, 0
      %p151 = por %p149, %p150
      %p152 = scmp.ne.s32.totalorder %s138, %s139
      %p153 = scmp.eq.s32.totalorder %s21, 1
      %p154 = por %p152, %p153
      %p156 = scmp.ne.s32.totalorder %s139, %s155
      %p157 = scmp.eq.s32.totalorder %s21, 0
      %p158 = por %p156, %p157
      %s159 = ssub.s32 %s22, %s34
      %p160 = scmp.eq.s32.totalorder %s159, 0
      %s162 = sadd.s32 %s161, 1
      %s163 = scalar_select %p160, %s161, %s162
      %p166 = pneg %p160
      %p167 = scmp.eq.s32.totalorder %s15, 1
      %p168 = por %p166, %p167
      %p169 = scmp.ne.s32.totalorder %s161, %s164
      %p170 = scmp.eq.s32.totalorder %s15, 0
      %p171 = por %p169, %p170
      %p172 = scmp.ne.s32.totalorder %s161, %s164
      %p173 = scmp.eq.s32.totalorder %s20, 1
      %p174 = por %p172, %p173
      %p175 = scmp.ne.s32.totalorder %s164, %s165
      %p176 = scmp.eq.s32.totalorder %s20, 0
      %p177 = por %p175, %p176
      %p178 = scmp.ne.s32.totalorder %s164, %s165
      %p179 = scmp.eq.s32.totalorder %s21, 1
      %p180 = por %p178, %p179
      %p182 = scmp.ne.s32.totalorder %s165, %s181
      %p183 = scmp.eq.s32.totalorder %s21, 0
      %p184 = por %p182, %p183
      %p185 = scmp.le.s32.totalorder 1, %s15
      %p186 = scmp.lt.s32.totalorder %s15, 3
      %p187 = pnand %p185, %p186
      %p188 = pneg %p187
      // Predicated region
      $region9: #{tpu_custom_call.1} parent=5 // pred_check
        _
      $region10: #{tpu_custom_call.1} parent=5 // pred_check_branch
        %190 = sbr.rel (%p187) target = $region12
      $region11: #{tpu_custom_call.1} parent=5 // pred_region
        %s191 = ssub.s32 %s15, 1
        // Predicated region
        $region13: #{tpu_custom_call.1} parent=11 // pred_check
          %p192 = pneg %p76
        $region14: #{tpu_custom_call.1} parent=11 // pred_check_branch
          %194 = sbr.rel (%p192) target = $region16
        $region15: #{tpu_custom_call.1} parent=11 // pred_region
          _
        $region16: #{tpu_custom_call.1} parent=11 // pred_fallthru
          _
        // Predicated region
        $region17: #{tpu_custom_call.1} parent=11 // pred_check
          %p195 = pneg %p97
        $region18: #{tpu_custom_call.1} parent=11 // pred_check_branch
          %197 = sbr.rel (%p195) target = $region20
        $region19: #{tpu_custom_call.1} parent=11 // pred_region
          _
        $region20: #{tpu_custom_call.1} parent=11 // pred_fallthru
          _
      $region12: #{tpu_custom_call.1} parent=5 // pred_fallthru
        _
      %p198 = scmp.lt.s32.totalorder %s15, 2
      // Predicated region
      $region21: #{tpu_custom_call.1} parent=5 // pred_check
        %p199 = pneg %p198
      $region22: #{tpu_custom_call.1} parent=5 // pred_check_branch
        %201 = sbr.rel (%p199) target = $region24
      $region23: #{tpu_custom_call.1} parent=5 // pred_region
        // Predicated region
        $region25: #{tpu_custom_call.1} parent=23 // pred_check
          %p202 = pneg %p49
        $region26: #{tpu_custom_call.1} parent=23 // pred_check_branch
          %204 = sbr.rel (%p202) target = $region28
        $region27: #{tpu_custom_call.1} parent=23 // pred_region
          %p205 = scmp.lt.s32.totalorder %s22, 1
          %s206 = scalar_select %p205, %s22, 1
          %p207 = scmp.lt.s32.totalorder %s23, 0
          %s208 = scalar_select %p207, %s23, 0
          %s209 = smul.addr %s206, 4
          %s210 = sadd.s32 %s208, %s209
          %s211 = smul.addr %s210, 4
          %s212 = scalar_lea.vmem %s0, %s211
        $region28: #{tpu_custom_call.1} parent=23 // pred_fallthru
          _
      $region24: #{tpu_custom_call.1} parent=5 // pred_fallthru
        _
      %p213 = scmp.le.s32.totalorder 1, %s15
      %p214 = scmp.lt.s32.totalorder %s15, 3
      %p215 = pnand %p213, %p214
      %p216 = pneg %p215
      // Predicated region
      $region29: #{tpu_custom_call.1} parent=5 // pred_check
        _
      $region30: #{tpu_custom_call.1} parent=5 // pred_check_branch
        %218 = sbr.rel (%p215) target = $region32
      $region31: #{tpu_custom_call.1} parent=5 // pred_region
        %s219 = ssub.s32 %s15, 1
        %p220 = scmp.lt.s32.totalorder %s24, 1
        %s221 = scalar_select %p220, %s24, 1
        %p222 = scmp.lt.s32.totalorder %s25, 0
        %s223 = scalar_select %p222, %s25, 0
        %s224 = smul.addr %s221, 4
        %s225 = sadd.s32 %s223, %s224
        %s226 = smul.addr %s225, 4
        %s227 = scalar_lea.vmem %s0, %s226
        %p228 = pneg %p55
        %p229 = pneg %p52
        %p230 = pneg %p76
        %p231 = pneg %p73
        %p232 = pneg %p97
        %p233 = pneg %p94
        %p234 = pneg %p125
        %p235 = pneg %p122
        %s236 = sand.u32 %s112, 1
        %s237 = scalar_lea.sflag [#allocation3], %s236
        %s238 = sand.u32 %s112, 1
        %s239 = smul.addr %s238, 128
        %s240 = scalar_lea.vmem [#allocation2], %s239
        %p241 = pneg %p151
        %p242 = pneg %p148
        %p243 = scmp.lt.s32.totalorder %s24, 1
        %s244 = scalar_select %p243, %s24, 1
        %s245 = smul.addr %s244, 16
        %s246 = smul.addr %s245, 8
        %s247 = scalar_lea.vmem %s4, %s246
        %p248 = pneg %p177
        %p249 = pneg %p174
        %p250 = scmp.lt.s32.totalorder %s24, 1
        %s251 = scalar_select %p250, %s24, 1
        %s252 = smul.addr %s251, 16
        %s253 = smul.addr %s252, 8
        %s254 = scalar_lea.vmem %s5, %s253
        %p255 = scmp.lt.s32.totalorder %s24, 1
        %s256 = scalar_select %p255, %s24, 1
        %p257 = scmp.lt.s32.totalorder %s25, 0
        %s258 = scalar_select %p257, %s25, 0
        %s259 = smul.addr %s256, 4
        %s260 = sadd.s32 %s258, %s259
        %s261 = smul.addr %s260, 4
        %s262 = scalar_lea.vmem %s0, %s261
        %p263 = scmp.lt.s32.totalorder %s24, 1
        %s264 = scalar_select %p263, %s24, 1
        %s265 = smul.addr %s264, 16
        %s266 = smul.addr %s265, 8
        %s267 = scalar_lea.vmem %s4, %s266
        %p268 = scmp.lt.s32.totalorder %s24, 1
        %s269 = scalar_select %p268, %s24, 1
        %s270 = smul.addr %s269, 16
        %s271 = smul.addr %s270, 8
        %s272 = scalar_lea.vmem %s5, %s271
        %p274 = scmp.eq.s32.totalorder %s25, 0
        // Predicated region
        $region33: #{tpu_custom_call.1} parent=31 // pred_check
          %p275 = pneg %p274
        $region34: #{tpu_custom_call.1} parent=31 // pred_check_branch
          %277 = sbr.rel (%p275) target = $region36
        $region35: #{tpu_custom_call.1} parent=31 // pred_region
          %vm278 = vcmask 7168
          %279 = vst.msk [vmem:[%s267] sm:$0xff] %vm278, -1.0
          %280 = vst.msk [vmem:[%s267 + $0x8] sm:$0xff] %vm278, -1.0
          %281 = vst.msk [vmem:[%s267 + $0x10] sm:$0xff] %vm278, -1.0
          %282 = vst.msk [vmem:[%s267 + $0x18] sm:$0xff] %vm278, -1.0
          %283 = vst.msk [vmem:[%s267 + $0x20] sm:$0xff] %vm278, -1.0
          %284 = vst.msk [vmem:[%s267 + $0x28] sm:$0xff] %vm278, -1.0
          %285 = vst.msk [vmem:[%s267 + $0x30] sm:$0xff] %vm278, -1.0
          %286 = vst.msk [vmem:[%s267 + $0x38] sm:$0xff] %vm278, -1.0
          %287 = vst.msk [vmem:[%s267 + $0x40] sm:$0xff] %vm278, -1.0
          %288 = vst.msk [vmem:[%s267 + $0x48] sm:$0xff] %vm278, -1.0
          %289 = vst.msk [vmem:[%s267 + $0x50] sm:$0xff] %vm278, -1.0
          %290 = vst.msk [vmem:[%s267 + $0x58] sm:$0xff] %vm278, -1.0
          %291 = vst.msk [vmem:[%s267 + $0x60] sm:$0xff] %vm278, -1.0
          %292 = vst.msk [vmem:[%s267 + $0x68] sm:$0xff] %vm278, -1.0
          %293 = vst.msk [vmem:[%s267 + $0x70] sm:$0xff] %vm278, -1.0
          %294 = vst.msk [vmem:[%s267 + $0x78] sm:$0xff] %vm278, -1.0
          %295 = vst.msk [vmem:[%s272] sm:$0xff] %vm278, 0
          %296 = vst.msk [vmem:[%s272 + $0x8] sm:$0xff] %vm278, 0
          %297 = vst.msk [vmem:[%s272 + $0x10] sm:$0xff] %vm278, 0
          %298 = vst.msk [vmem:[%s272 + $0x18] sm:$0xff] %vm278, 0
          %299 = vst.msk [vmem:[%s272 + $0x20] sm:$0xff] %vm278, 0
          %300 = vst.msk [vmem:[%s272 + $0x28] sm:$0xff] %vm278, 0
          %301 = vst.msk [vmem:[%s272 + $0x30] sm:$0xff] %vm278, 0
          %302 = vst.msk [vmem:[%s272 + $0x38] sm:$0xff] %vm278, 0
          %303 = vst.msk [vmem:[%s272 + $0x40] sm:$0xff] %vm278, 0
          %304 = vst.msk [vmem:[%s272 + $0x48] sm:$0xff] %vm278, 0
          %305 = vst.msk [vmem:[%s272 + $0x50] sm:$0xff] %vm278, 0
          %306 = vst.msk [vmem:[%s272 + $0x58] sm:$0xff] %vm278, 0
          %307 = vst.msk [vmem:[%s272 + $0x60] sm:$0xff] %vm278, 0
          %308 = vst.msk [vmem:[%s272 + $0x68] sm:$0xff] %vm278, 0
          %309 = vst.msk [vmem:[%s272 + $0x70] sm:$0xff] %vm278, 0
          %310 = vst.msk [vmem:[%s272 + $0x78] sm:$0xff] %vm278, 0
        $region36: #{tpu_custom_call.1} parent=31 // pred_fallthru
          _
        %v311 = vld [vmem:[%s1] sm:$0xf]
        %v312 = vld [vmem:[%s1 + $0x4] sm:$0xf]
        %v313 = vld [vmem:[%s1 + $0x8] sm:$0xf]
        %v314 = vld [vmem:[%s1 + $0xc] sm:$0xf]
        %v315 = vld [vmem:[%s1 + $0x10] sm:$0xf]
        %v316 = vld [vmem:[%s1 + $0x14] sm:$0xf]
        %v317 = vld [vmem:[%s1 + $0x18] sm:$0xf]
        %v318 = vld [vmem:[%s1 + $0x1c] sm:$0xf]
        %v319 = vld [vmem:[%s1 + $0x20] sm:$0xf]
        %v320 = vld [vmem:[%s1 + $0x24] sm:$0xf]
        %v321 = vld [vmem:[%s1 + $0x28] sm:$0xf]
        %v322 = vld [vmem:[%s1 + $0x2c] sm:$0xf]
        %v323 = vld [vmem:[%s1 + $0x30] sm:$0xf]
        %v324 = vld [vmem:[%s1 + $0x34] sm:$0xf]
        %v325 = vld [vmem:[%s1 + $0x38] sm:$0xf]
        %v326 = vld [vmem:[%s1 + $0x3c] sm:$0xf]
        %v327 = vld [vmem:[%s2] sm:$0xff]
        %v328 = vld [vmem:[%s2 + $0x8] sm:$0xff]
        %v329 = vld [vmem:[%s2 + $0x10] sm:$0xff]
        %v330 = vld [vmem:[%s2 + $0x18] sm:$0xff]
        %v331 = vld [vmem:[%s2 + $0x20] sm:$0xff]
        %v332 = vld [vmem:[%s2 + $0x28] sm:$0xff]
        %v333 = vld [vmem:[%s2 + $0x30] sm:$0xff]
        %v334 = vld [vmem:[%s2 + $0x38] sm:$0xff]
        %v335 = vld [vmem:[%s2 + $0x40] sm:$0xff]
        %v336 = vld [vmem:[%s2 + $0x48] sm:$0xff]
        %v337 = vld [vmem:[%s2 + $0x50] sm:$0xff]
        %v338 = vld [vmem:[%s2 + $0x58] sm:$0xff]
        %v339 = vld [vmem:[%s2 + $0x60] sm:$0xff]
        %v340 = vld [vmem:[%s2 + $0x68] sm:$0xff]
        %v341 = vld [vmem:[%s2 + $0x70] sm:$0xff]
        %v342 = vld [vmem:[%s2 + $0x78] sm:$0xff]
        %v343 = vlaneseq
        %v344 = vand.u32 %v343, 127
        %s345 = smul.u32 %s25, 128
        %v346 = vstv %s345
        %v347 = vadd.s32 %v344, %v346
        %vm348 = vcmp.lt.s32.totalorder %v347, 64
        %v349 = vld [vmem:[%s262] sm:$0xf]
        %v350 = vld [vmem:[%s262 + $0x4] sm:$0xf]
        %v351 = vld [vmem:[%s262 + $0x8] sm:$0xf]
        %v352 = vld [vmem:[%s262 + $0xc] sm:$0xf]
        %354 = vset.pattern.permute.xlu0 0
        %355 = vperm.xlu0 %354, %v327
        %v356 = vpop.permute.xlu0 %355
        %359 = vset.pattern.permute.xlu0 0
        %360 = vperm.xlu0 %359, %v328
        %v361 = vpop.permute.xlu0 %360
        %364 = vset.pattern.permute.xlu0 0
        %365 = vperm.xlu0 %364, %v329
        %v366 = vpop.permute.xlu0 %365
        %369 = vset.pattern.permute.xlu0 0
        %370 = vperm.xlu0 %369, %v330
        %v371 = vpop.permute.xlu0 %370
        %374 = vset.pattern.permute.xlu0 0
        %375 = vperm.xlu0 %374, %v331
        %v376 = vpop.permute.xlu0 %375
        %379 = vset.pattern.permute.xlu0 0
        %380 = vperm.xlu0 %379, %v332
        %v381 = vpop.permute.xlu0 %380
        %384 = vset.pattern.permute.xlu0 0
        %385 = vperm.xlu0 %384, %v333
        %v386 = vpop.permute.xlu0 %385
        %389 = vset.pattern.permute.xlu0 0
        %390 = vperm.xlu0 %389, %v334
        %v391 = vpop.permute.xlu0 %390
        %394 = vset.pattern.permute.xlu0 0
        %395 = vperm.xlu0 %394, %v335
        %v396 = vpop.permute.xlu0 %395
        %399 = vset.pattern.permute.xlu0 0
        %400 = vperm.xlu0 %399, %v336
        %v401 = vpop.permute.xlu0 %400
        %404 = vset.pattern.permute.xlu0 0
        %405 = vperm.xlu0 %404, %v337
        %v406 = vpop.permute.xlu0 %405
        %409 = vset.pattern.permute.xlu0 0
        %410 = vperm.xlu0 %409, %v338
        %v411 = vpop.permute.xlu0 %410
        %414 = vset.pattern.permute.xlu0 0
        %415 = vperm.xlu0 %414, %v339
        %v416 = vpop.permute.xlu0 %415
        %419 = vset.pattern.permute.xlu0 0
        %420 = vperm.xlu0 %419, %v340
        %v421 = vpop.permute.xlu0 %420
        %424 = vset.pattern.permute.xlu0 0
        %425 = vperm.xlu0 %424, %v341
        %v426 = vpop.permute.xlu0 %425
        %429 = vset.pattern.permute.xlu0 0
        %430 = vperm.xlu0 %429, %v342
        %v431 = vpop.permute.xlu0 %430
        %v449 = vunpack.c.l.b16 %v311
        %v450 = vunpack.c.l.b16 %v312
        %v451 = vunpack.c.l.b16 %v313
        %v452 = vunpack.c.l.b16 %v314
        %v453 = vunpack.c.l.b16 %v315
        %v454 = vunpack.c.l.b16 %v316
        %v455 = vunpack.c.l.b16 %v317
        %v456 = vunpack.c.l.b16 %v318
        %v457 = vunpack.c.l.b16 %v319
        %v458 = vunpack.c.l.b16 %v320
        %v459 = vunpack.c.l.b16 %v321
        %v460 = vunpack.c.l.b16 %v322
        %v461 = vunpack.c.l.b16 %v323
        %v462 = vunpack.c.l.b16 %v324
        %v463 = vunpack.c.l.b16 %v325
        %v464 = vunpack.c.l.b16 %v326
        %v465 = vpack.c.b16 %v450, %v449
        %v466 = vpack.c.b16 %v452, %v451
        %v467 = vpack.c.b16 %v454, %v453
        %v468 = vpack.c.b16 %v456, %v455
        %v469 = vpack.c.b16 %v458, %v457
        %v470 = vpack.c.b16 %v460, %v459
        %v471 = vpack.c.b16 %v462, %v461
        %v472 = vpack.c.b16 %v464, %v463
        %v477 = vunpack.c.l.b16 %v349
        %v478 = vunpack.c.l.b16 %v350
        %v479 = vunpack.c.l.b16 %v351
        %v480 = vunpack.c.l.b16 %v352
        %v481 = vpack.c.b16 %v478, %v477
        %v482 = vpack.c.b16 %v480, %v479
        %vm485 = vcmask 261120
        %v487 = vsel %vm485, %v465, 0
        %v490 = vsel %vm485, %v466, 0
        %v493 = vsel %vm485, %v467, 0
        %v496 = vsel %vm485, %v468, 0
        %v499 = vsel %vm485, %v469, 0
        %v502 = vsel %vm485, %v470, 0
        %v505 = vsel %vm485, %v471, 0
        %v508 = vsel %vm485, %v472, 0
        %510 = vmatprep.subr.bf16.mxu0 0
        %511 = vmatpush1.bf16.msra.mxu0 %v481
        %512 = vmatprep.subr.bf16.mxu0 0
        %513 = vmatpush1.bf16.msra.mxu0 %v482
        %514 = vmatprep.subr.bf16.mxu0 0
        %515 = vmatpush1.bf16.msra.mxu0 0
        %516 = vmatprep.subr.bf16.mxu0 0
        %517 = vmatpush1.bf16.msra.mxu0 0
        %518 = vmatprep.subr.bf16.mxu0 0
        %519 = vmatpush1.bf16.msra.mxu0 0
        %520 = vmatprep.subr.bf16.mxu0 0
        %521 = vmatpush1.bf16.msra.mxu0 0
        %522 = vmatprep.subr.bf16.mxu0 0
        %523 = vmatpush1.bf16.msra.mxu0 0
        %524 = vmatprep.subr.bf16.mxu0 0
        %525 = vmatpush1.bf16.msra.mxu0 0
        %526 = vmatprep.subr.bf16.mxu0 0
        %527 = vmatpush1.bf16.msra.mxu0 0
        %528 = vmatprep.subr.bf16.mxu0 0
        %529 = vmatpush1.bf16.msra.mxu0 0
        %530 = vmatprep.subr.bf16.mxu0 0
        %531 = vmatpush1.bf16.msra.mxu0 0
        %532 = vmatprep.subr.bf16.mxu0 0
        %533 = vmatpush1.bf16.msra.mxu0 0
        %534 = vmatprep.subr.bf16.mxu0 0
        %535 = vmatpush1.bf16.msra.mxu0 0
        %536 = vmatprep.subr.bf16.mxu0 0
        %537 = vmatpush1.bf16.msra.mxu0 0
        %538 = vmatprep.subr.bf16.mxu0 0
        %539 = vmatpush1.bf16.msra.mxu0 0
        %540 = vmatprep.subr.bf16.mxu0 0
        %541 = vmatpush1.bf16.msra.mxu0 0
        %542 = vmatprep.mubr.bf16.mxu0 0
        %543 = vmatmul.mubr.bf16.gmra.mrb[0].mxu0 %v487
        %v544 = vpop.f32.mrb[0].mxu0
        %v545 = vadd.f32 %v356, %v544
        %v546 = vpop.f32.mrb[0].mxu0
        %v547 = vpop.f32.mrb[0].mxu0
        %v548 = vadd.f32 %v361, %v547
        %v549 = vpop.f32.mrb[0].mxu0
        %550 = vmatprep.mubr.bf16.mxu0 0
        %551 = vmatmul.mubr.bf16.gmra.mrb[0].mxu0 %v490
        %v552 = vpop.f32.mrb[0].mxu0
        %v553 = vadd.f32 %v366, %v552
        %v554 = vpop.f32.mrb[0].mxu0
        %v555 = vpop.f32.mrb[0].mxu0
        %v556 = vadd.f32 %v371, %v555
        %v557 = vpop.f32.mrb[0].mxu0
        %558 = vmatprep.mubr.bf16.mxu0 0
        %559 = vmatmul.mubr.bf16.gmra.mrb[0].mxu0 %v493
        %v560 = vpop.f32.mrb[0].mxu0
        %v561 = vadd.f32 %v376, %v560
        %v562 = vpop.f32.mrb[0].mxu0
        %v563 = vpop.f32.mrb[0].mxu0
        %v564 = vadd.f32 %v381, %v563
        %v565 = vpop.f32.mrb[0].mxu0
        %566 = vmatprep.mubr.bf16.mxu0 0
        %567 = vmatmul.mubr.bf16.gmra.mrb[0].mxu0 %v496
        %v568 = vpop.f32.mrb[0].mxu0
        %v569 = vadd.f32 %v386, %v568
        %v570 = vpop.f32.mrb[0].mxu0
        %v571 = vpop.f32.mrb[0].mxu0
        %v572 = vadd.f32 %v391, %v571
        %v573 = vpop.f32.mrb[0].mxu0
        %574 = vmatprep.mubr.bf16.mxu0 0
        %575 = vmatmul.mubr.bf16.gmra.mrb[0].mxu0 %v499
        %v576 = vpop.f32.mrb[0].mxu0
        %v577 = vadd.f32 %v396, %v576
        %v578 = vpop.f32.mrb[0].mxu0
        %v579 = vpop.f32.mrb[0].mxu0
        %v580 = vadd.f32 %v401, %v579
        %v581 = vpop.f32.mrb[0].mxu0
        %582 = vmatprep.mubr.bf16.mxu0 0
        %583 = vmatmul.mubr.bf16.gmra.mrb[0].mxu0 %v502
        %v584 = vpop.f32.mrb[0].mxu0
        %v585 = vadd.f32 %v406, %v584
        %v586 = vpop.f32.mrb[0].mxu0
        %v587 = vpop.f32.mrb[0].mxu0
        %v588 = vadd.f32 %v411, %v587
        %v589 = vpop.f32.mrb[0].mxu0
        %590 = vmatprep.mubr.bf16.mxu0 0
        %591 = vmatmul.mubr.bf16.gmra.mrb[0].mxu0 %v505
        %v592 = vpop.f32.mrb[0].mxu0
        %v593 = vadd.f32 %v416, %v592
        %v594 = vpop.f32.mrb[0].mxu0
        %v595 = vpop.f32.mrb[0].mxu0
        %v596 = vadd.f32 %v421, %v595
        %v597 = vpop.f32.mrb[0].mxu0
        %598 = vmatprep.mubr.bf16.mxu0 0
        %599 = vmatmul.mubr.bf16.gmra.mrb[0].mxu0 %v508
        %v600 = vpop.f32.mrb[0].mxu0
        %v601 = vadd.f32 %v426, %v600
        %v602 = vpop.f32.mrb[0].mxu0
        %v603 = vpop.f32.mrb[0].mxu0
        %v604 = vadd.f32 %v431, %v603
        %v605 = vpop.f32.mrb[0].mxu0
        %606 = vdwg.mxu0
        %v607 = vmax.f32 %v545, %v561
        %v608 = vmax.f32 %v548, %v564
        %v609 = vmax.f32 %v553, %v569
        %v610 = vmax.f32 %v556, %v572
        %v611 = vmax.f32 %v607, %v577
        %v612 = vmax.f32 %v608, %v580
        %v613 = vmax.f32 %v609, %v585
        %v614 = vmax.f32 %v610, %v588
        %v615 = vmax.f32 %v611, %v593
        %v616 = vmax.f32 %v612, %v596
        %v617 = vmax.f32 %v613, %v601
        %v618 = vmax.f32 %v614, %v604
        %v619 = vmax.f32 %v615, %v616
        %v620 = vmax.f32 %v617, %v618
        %v621 = vmax.f32 %v619, %v620
        %v622 = vrot.slane %v621, 4
        %v623 = vmax.f32 %v621, %v622
        %v624 = vrot.slane %v623, 2
        %v625 = vmax.f32 %v623, %v624
        %v626 = vrot.slane %v625, 1
        %v627 = vmax.f32 %v625, %v626
        %v628 = vsub.f32 %v545, %v627
        %v629 = vsub.f32 %v548, %v627
        %v630 = vsub.f32 %v553, %v627
        %v631 = vsub.f32 %v556, %v627
        %v632 = vsub.f32 %v561, %v627
        %v633 = vsub.f32 %v564, %v627
        %v634 = vsub.f32 %v569, %v627
        %v635 = vsub.f32 %v572, %v627
        %v636 = vsub.f32 %v577, %v627
        %v637 = vsub.f32 %v580, %v627
        %v638 = vsub.f32 %v585, %v627
        %v639 = vsub.f32 %v588, %v627
        %v640 = vsub.f32 %v593, %v627
        %v641 = vsub.f32 %v596, %v627
        %v642 = vsub.f32 %v601, %v627
        %v643 = vsub.f32 %v604, %v627
        %v644 = vmul.f32 %v628, 1.442695
        %v645 = vpow.pop %v644
        %v646 = vmul.f32 %v629, 1.442695
        %v647 = vpow.pop %v646
        %v648 = vmul.f32 %v630, 1.442695
        %v649 = vpow.pop %v648
        %v650 = vmul.f32 %v631, 1.442695
        %v651 = vpow.pop %v650
        %v652 = vmul.f32 %v632, 1.442695
        %v653 = vpow.pop %v652
        %v654 = vmul.f32 %v633, 1.442695
        %v655 = vpow.pop %v654
        %v656 = vmul.f32 %v634, 1.442695
        %v657 = vpow.pop %v656
        %v658 = vmul.f32 %v635, 1.442695
        %v659 = vpow.pop %v658
        %v660 = vmul.f32 %v636, 1.442695
        %v661 = vpow.pop %v660
        %v662 = vmul.f32 %v637, 1.442695
        %v663 = vpow.pop %v662
        %v664 = vmul.f32 %v638, 1.442695
        %v665 = vpow.pop %v664
        %v666 = vmul.f32 %v639, 1.442695
        %v667 = vpow.pop %v666
        %v668 = vmul.f32 %v640, 1.442695
        %v669 = vpow.pop %v668
        %v670 = vmul.f32 %v641, 1.442695
        %v671 = vpow.pop %v670
        %v672 = vmul.f32 %v642, 1.442695
        %v673 = vpow.pop %v672
        %v674 = vmul.f32 %v643, 1.442695
        %v675 = vpow.pop %v674
        %v676 = vadd.f32 %v645, %v647
        %v677 = vadd.f32 %v676, %v649
        %v678 = vadd.f32 %v677, %v651
        %v679 = vadd.f32 %v678, %v653
        %v680 = vadd.f32 %v679, %v655
        %v681 = vadd.f32 %v680, %v657
        %v682 = vadd.f32 %v681, %v659
        %v683 = vadd.f32 %v682, %v661
        %v684 = vadd.f32 %v683, %v663
        %v685 = vadd.f32 %v684, %v665
        %v686 = vadd.f32 %v685, %v667
        %v687 = vadd.f32 %v686, %v669
        %v688 = vadd.f32 %v687, %v671
        %v689 = vadd.f32 %v688, %v673
        %v690 = vadd.f32 %v689, %v675
        %v691 = vrot.slane %v690, 4
        %v692 = vadd.f32 %v690, %v691
        %v693 = vrot.slane %v692, 2
        %v694 = vadd.f32 %v692, %v693
        %v695 = vrot.slane %v694, 1
        %v696 = vadd.f32 %v694, %v695
        %v697 = vrcp.pop %v696
        %v698 = vmul.f32 %v645, %v697
        %v699 = vmul.f32 %v647, %v697
        %v700 = vmul.f32 %v649, %v697
        %v701 = vmul.f32 %v651, %v697
        %v702 = vmul.f32 %v653, %v697
        %v703 = vmul.f32 %v655, %v697
        %v704 = vmul.f32 %v657, %v697
        %v705 = vmul.f32 %v659, %v697
        %v706 = vmul.f32 %v661, %v697
        %v707 = vmul.f32 %v663, %v697
        %v708 = vmul.f32 %v665, %v697
        %v709 = vmul.f32 %v667, %v697
        %v710 = vmul.f32 %v669, %v697
        %v711 = vmul.f32 %v671, %v697
        %v712 = vmul.f32 %v673, %v697
        %v713 = vmul.f32 %v675, %v697
        %714 = vst [vmem:[%s240] sm:$0xff] %v698
        %715 = vst [vmem:[%s240 + $0x8] sm:$0xff] %v699
        %716 = vst [vmem:[%s240 + $0x10] sm:$0xff] %v700
        %717 = vst [vmem:[%s240 + $0x18] sm:$0xff] %v701
        %718 = vst [vmem:[%s240 + $0x20] sm:$0xff] %v702
        %719 = vst [vmem:[%s240 + $0x28] sm:$0xff] %v703
        %720 = vst [vmem:[%s240 + $0x30] sm:$0xff] %v704
        %721 = vst [vmem:[%s240 + $0x38] sm:$0xff] %v705
        %722 = vst [vmem:[%s240 + $0x40] sm:$0xff] %v706
        %723 = vst [vmem:[%s240 + $0x48] sm:$0xff] %v707
        %724 = vst [vmem:[%s240 + $0x50] sm:$0xff] %v708
        %725 = vst [vmem:[%s240 + $0x58] sm:$0xff] %v709
        %726 = vst [vmem:[%s240 + $0x60] sm:$0xff] %v710
        %727 = vst [vmem:[%s240 + $0x68] sm:$0xff] %v711
        %728 = vst [vmem:[%s240 + $0x70] sm:$0xff] %v712
        %729 = vst [vmem:[%s240 + $0x78] sm:$0xff] %v713
        %v730 = vsel %vm348, 1, 0
        %vm731 = vcmp.eq.s32.totalorder %v730, 1
        %v732 = vsel %vm731, %v698, -1.0
        %v733 = vsel %vm731, %v699, -1.0
        %v734 = vsel %vm731, %v700, -1.0
        %v735 = vsel %vm731, %v701, -1.0
        %v736 = vsel %vm731, %v702, -1.0
        %v737 = vsel %vm731, %v703, -1.0
        %v738 = vsel %vm731, %v704, -1.0
        %v739 = vsel %vm731, %v705, -1.0
        %v740 = vsel %vm731, %v706, -1.0
        %v741 = vsel %vm731, %v707, -1.0
        %v742 = vsel %vm731, %v708, -1.0
        %v743 = vsel %vm731, %v709, -1.0
        %v744 = vsel %vm731, %v710, -1.0
        %v745 = vsel %vm731, %v711, -1.0
        %v746 = vsel %vm731, %v712, -1.0
        %v747 = vsel %vm731, %v713, -1.0
        %748 = vmax.xlane.f32.xlu0 %v732
        %v749 = vpop.xlane.xlu0 %748
        %750 = vmax.xlane.f32.xlu0 %v733
        %v751 = vpop.xlane.xlu0 %750
        %752 = vmax.xlane.f32.xlu0 %v734
        %v753 = vpop.xlane.xlu0 %752
        %754 = vmax.xlane.f32.xlu0 %v735
        %v755 = vpop.xlane.xlu0 %754
        %756 = vmax.xlane.f32.xlu0 %v736
        %v757 = vpop.xlane.xlu0 %756
        %758 = vmax.xlane.f32.xlu0 %v737
        %v759 = vpop.xlane.xlu0 %758
        %760 = vmax.xlane.f32.xlu0 %v738
        %v761 = vpop.xlane.xlu0 %760
        %762 = vmax.xlane.f32.xlu0 %v739
        %v763 = vpop.xlane.xlu0 %762
        %764 = vmax.xlane.f32.xlu0 %v740
        %v765 = vpop.xlane.xlu0 %764
        %766 = vmax.xlane.f32.xlu0 %v741
        %v767 = vpop.xlane.xlu0 %766
        %768 = vmax.xlane.f32.xlu0 %v742
        %v769 = vpop.xlane.xlu0 %768
        %770 = vmax.xlane.f32.xlu0 %v743
        %v771 = vpop.xlane.xlu0 %770
        %772 = vmax.xlane.f32.xlu0 %v744
        %v773 = vpop.xlane.xlu0 %772
        %774 = vmax.xlane.f32.xlu0 %v745
        %v775 = vpop.xlane.xlu0 %774
        %776 = vmax.xlane.f32.xlu0 %v746
        %v777 = vpop.xlane.xlu0 %776
        %778 = vmax.xlane.f32.xlu0 %v747
        %v779 = vpop.xlane.xlu0 %778
        %vm780 = vcmp.eq.f32.partialorder %v732, %v749
        %vm781 = vcmp.eq.f32.partialorder %v733, %v751
        %vm782 = vcmp.eq.f32.partialorder %v734, %v753
        %vm783 = vcmp.eq.f32.partialorder %v735, %v755
        %vm784 = vcmp.eq.f32.partialorder %v736, %v757
        %vm785 = vcmp.eq.f32.partialorder %v737, %v759
        %vm786 = vcmp.eq.f32.partialorder %v738, %v761
        %vm787 = vcmp.eq.f32.partialorder %v739, %v763
        %vm788 = vcmp.eq.f32.partialorder %v740, %v765
        %vm789 = vcmp.eq.f32.partialorder %v741, %v767
        %vm790 = vcmp.eq.f32.partialorder %v742, %v769
        %vm791 = vcmp.eq.f32.partialorder %v743, %v771
        %vm792 = vcmp.eq.f32.partialorder %v744, %v773
        %vm793 = vcmp.eq.f32.partialorder %v745, %v775
        %vm794 = vcmp.eq.f32.partialorder %v746, %v777
        %vm795 = vcmp.eq.f32.partialorder %v747, %v779
        %v796 = vsel %vm780, %v347, 1073741824
        %v797 = vsel %vm781, %v347, 1073741824
        %v798 = vsel %vm782, %v347, 1073741824
        %v799 = vsel %vm783, %v347, 1073741824
        %v800 = vsel %vm784, %v347, 1073741824
        %v801 = vsel %vm785, %v347, 1073741824
        %v802 = vsel %vm786, %v347, 1073741824
        %v803 = vsel %vm787, %v347, 1073741824
        %v804 = vsel %vm788, %v347, 1073741824
        %v805 = vsel %vm789, %v347, 1073741824
        %v806 = vsel %vm790, %v347, 1073741824
        %v807 = vsel %vm791, %v347, 1073741824
        %v808 = vsel %vm792, %v347, 1073741824
        %v809 = vsel %vm793, %v347, 1073741824
        %v810 = vsel %vm794, %v347, 1073741824
        %v811 = vsel %vm795, %v347, 1073741824
        %v812 = vand.u32 %v796, 65535
        %v813 = vshra.s32 %v796, 16
        %v814 = vcvt.s32.f32 %v812
        %v815 = vcvt.s32.f32 %v813
        %816 = vmin.xlane.f32.xlu0 %v815
        %v817 = vpop.xlane.xlu0 %816
        %vm818 = vcmp.eq.f32.partialorder %v815, %v817
        %v819 = vsel %vm818, %v814, inf
        %820 = vmin.xlane.f32.xlu0 %v819
        %v821 = vpop.xlane.xlu0 %820
        %v822 = vcvt.f32.s32 %v821
        %v823 = vcvt.f32.s32 %v817
        %v824 = vshll.u32 %v823, 16
        %v825 = vadd.s32 %v824, %v822
        %v826 = vand.u32 %v797, 65535
        %v827 = vshra.s32 %v797, 16
        %v828 = vcvt.s32.f32 %v826
        %v829 = vcvt.s32.f32 %v827
        %830 = vmin.xlane.f32.xlu0 %v829
        %v831 = vpop.xlane.xlu0 %830
        %vm832 = vcmp.eq.f32.partialorder %v829, %v831
        %v833 = vsel %vm832, %v828, inf
        %834 = vmin.xlane.f32.xlu0 %v833
        %v835 = vpop.xlane.xlu0 %834
        %v836 = vcvt.f32.s32 %v835
        %v837 = vcvt.f32.s32 %v831
        %v838 = vshll.u32 %v837, 16
        %v839 = vadd.s32 %v838, %v836
        %v840 = vand.u32 %v798, 65535
        %v841 = vshra.s32 %v798, 16
        %v842 = vcvt.s32.f32 %v840
        %v843 = vcvt.s32.f32 %v841
        %844 = vmin.xlane.f32.xlu0 %v843
        %v845 = vpop.xlane.xlu0 %844
        %vm846 = vcmp.eq.f32.partialorder %v843, %v845
        %v847 = vsel %vm846, %v842, inf
        %848 = vmin.xlane.f32.xlu0 %v847
        %v849 = vpop.xlane.xlu0 %848
        %v850 = vcvt.f32.s32 %v849
        %v851 = vcvt.f32.s32 %v845
        %v852 = vshll.u32 %v851, 16
        %v853 = vadd.s32 %v852, %v850
        %v854 = vand.u32 %v799, 65535
        %v855 = vshra.s32 %v799, 16
        %v856 = vcvt.s32.f32 %v854
        %v857 = vcvt.s32.f32 %v855
        %858 = vmin.xlane.f32.xlu0 %v857
        %v859 = vpop.xlane.xlu0 %858
        %vm860 = vcmp.eq.f32.partialorder %v857, %v859
        %v861 = vsel %vm860, %v856, inf
        %862 = vmin.xlane.f32.xlu0 %v861
        %v863 = vpop.xlane.xlu0 %862
        %v864 = vcvt.f32.s32 %v863
        %v865 = vcvt.f32.s32 %v859
        %v866 = vshll.u32 %v865, 16
        %v867 = vadd.s32 %v866, %v864
        %v868 = vand.u32 %v800, 65535
        %v869 = vshra.s32 %v800, 16
        %v870 = vcvt.s32.f32 %v868
        %v871 = vcvt.s32.f32 %v869
        %872 = vmin.xlane.f32.xlu0 %v871
        %v873 = vpop.xlane.xlu0 %872
        %vm874 = vcmp.eq.f32.partialorder %v871, %v873
        %v875 = vsel %vm874, %v870, inf
        %876 = vmin.xlane.f32.xlu0 %v875
        %v877 = vpop.xlane.xlu0 %876
        %v878 = vcvt.f32.s32 %v877
        %v879 = vcvt.f32.s32 %v873
        %v880 = vshll.u32 %v879, 16
        %v881 = vadd.s32 %v880, %v878
        %v882 = vand.u32 %v801, 65535
        %v883 = vshra.s32 %v801, 16
        %v884 = vcvt.s32.f32 %v882
        %v885 = vcvt.s32.f32 %v883
        %886 = vmin.xlane.f32.xlu0 %v885
        %v887 = vpop.xlane.xlu0 %886
        %vm888 = vcmp.eq.f32.partialorder %v885, %v887
        %v889 = vsel %vm888, %v884, inf
        %890 = vmin.xlane.f32.xlu0 %v889
        %v891 = vpop.xlane.xlu0 %890
        %v892 = vcvt.f32.s32 %v891
        %v893 = vcvt.f32.s32 %v887
        %v894 = vshll.u32 %v893, 16
        %v895 = vadd.s32 %v894, %v892
        %v896 = vand.u32 %v802, 65535
        %v897 = vshra.s32 %v802, 16
        %v898 = vcvt.s32.f32 %v896
        %v899 = vcvt.s32.f32 %v897
        %900 = vmin.xlane.f32.xlu0 %v899
        %v901 = vpop.xlane.xlu0 %900
        %vm902 = vcmp.eq.f32.partialorder %v899, %v901
        %v903 = vsel %vm902, %v898, inf
        %904 = vmin.xlane.f32.xlu0 %v903
        %v905 = vpop.xlane.xlu0 %904
        %v906 = vcvt.f32.s32 %v905
        %v907 = vcvt.f32.s32 %v901
        %v908 = vshll.u32 %v907, 16
        %v909 = vadd.s32 %v908, %v906
        %v910 = vand.u32 %v803, 65535
        %v911 = vshra.s32 %v803, 16
        %v912 = vcvt.s32.f32 %v910
        %v913 = vcvt.s32.f32 %v911
        %914 = vmin.xlane.f32.xlu0 %v913
        %v915 = vpop.xlane.xlu0 %914
        %vm916 = vcmp.eq.f32.partialorder %v913, %v915
        %v917 = vsel %vm916, %v912, inf
        %918 = vmin.xlane.f32.xlu0 %v917
        %v919 = vpop.xlane.xlu0 %918
        %v920 = vcvt.f32.s32 %v919
        %v921 = vcvt.f32.s32 %v915
        %v922 = vshll.u32 %v921, 16
        %v923 = vadd.s32 %v922, %v920
        %v924 = vand.u32 %v804, 65535
        %v925 = vshra.s32 %v804, 16
        %v926 = vcvt.s32.f32 %v924
        %v927 = vcvt.s32.f32 %v925
        %928 = vmin.xlane.f32.xlu0 %v927
        %v929 = vpop.xlane.xlu0 %928
        %vm930 = vcmp.eq.f32.partialorder %v927, %v929
        %v931 = vsel %vm930, %v926, inf
        %932 = vmin.xlane.f32.xlu0 %v931
        %v933 = vpop.xlane.xlu0 %932
        %v934 = vcvt.f32.s32 %v933
        %v935 = vcvt.f32.s32 %v929
        %v936 = vshll.u32 %v935, 16
        %v937 = vadd.s32 %v936, %v934
        %v938 = vand.u32 %v805, 65535
        %v939 = vshra.s32 %v805, 16
        %v940 = vcvt.s32.f32 %v938
        %v941 = vcvt.s32.f32 %v939
        %942 = vmin.xlane.f32.xlu0 %v941
        %v943 = vpop.xlane.xlu0 %942
        %vm944 = vcmp.eq.f32.partialorder %v941, %v943
        %v945 = vsel %vm944, %v940, inf
        %946 = vmin.xlane.f32.xlu0 %v945
        %v947 = vpop.xlane.xlu0 %946
        %v948 = vcvt.f32.s32 %v947
        %v949 = vcvt.f32.s32 %v943
        %v950 = vshll.u32 %v949, 16
        %v951 = vadd.s32 %v950, %v948
        %v952 = vand.u32 %v806, 65535
        %v953 = vshra.s32 %v806, 16
        %v954 = vcvt.s32.f32 %v952
        %v955 = vcvt.s32.f32 %v953
        %956 = vmin.xlane.f32.xlu0 %v955
        %v957 = vpop.xlane.xlu0 %956
        %vm958 = vcmp.eq.f32.partialorder %v955, %v957
        %v959 = vsel %vm958, %v954, inf
        %960 = vmin.xlane.f32.xlu0 %v959
        %v961 = vpop.xlane.xlu0 %960
        %v962 = vcvt.f32.s32 %v961
        %v963 = vcvt.f32.s32 %v957
        %v964 = vshll.u32 %v963, 16
        %v965 = vadd.s32 %v964, %v962
        %v966 = vand.u32 %v807, 65535
        %v967 = vshra.s32 %v807, 16
        %v968 = vcvt.s32.f32 %v966
        %v969 = vcvt.s32.f32 %v967
        %970 = vmin.xlane.f32.xlu0 %v969
        %v971 = vpop.xlane.xlu0 %970
        %vm972 = vcmp.eq.f32.partialorder %v969, %v971
        %v973 = vsel %vm972, %v968, inf
        %974 = vmin.xlane.f32.xlu0 %v973
        %v975 = vpop.xlane.xlu0 %974
        %v976 = vcvt.f32.s32 %v975
        %v977 = vcvt.f32.s32 %v971
        %v978 = vshll.u32 %v977, 16
        %v979 = vadd.s32 %v978, %v976
        %v980 = vand.u32 %v808, 65535
        %v981 = vshra.s32 %v808, 16
        %v982 = vcvt.s32.f32 %v980
        %v983 = vcvt.s32.f32 %v981
        %984 = vmin.xlane.f32.xlu0 %v983
        %v985 = vpop.xlane.xlu0 %984
        %vm986 = vcmp.eq.f32.partialorder %v983, %v985
        %v987 = vsel %vm986, %v982, inf
        %988 = vmin.xlane.f32.xlu0 %v987
        %v989 = vpop.xlane.xlu0 %988
        %v990 = vcvt.f32.s32 %v989
        %v991 = vcvt.f32.s32 %v985
        %v992 = vshll.u32 %v991, 16
        %v993 = vadd.s32 %v992, %v990
        %v994 = vand.u32 %v809, 65535
        %v995 = vshra.s32 %v809, 16
        %v996 = vcvt.s32.f32 %v994
        %v997 = vcvt.s32.f32 %v995
        %998 = vmin.xlane.f32.xlu0 %v997
        %v999 = vpop.xlane.xlu0 %998
        %vm1000 = vcmp.eq.f32.partialorder %v997, %v999
        %v1001 = vsel %vm1000, %v996, inf
        %1002 = vmin.xlane.f32.xlu0 %v1001
        %v1003 = vpop.xlane.xlu0 %1002
        %v1004 = vcvt.f32.s32 %v1003
        %v1005 = vcvt.f32.s32 %v999
        %v1006 = vshll.u32 %v1005, 16
        %v1007 = vadd.s32 %v1006, %v1004
        %v1008 = vand.u32 %v810, 65535
        %v1009 = vshra.s32 %v810, 16
        %v1010 = vcvt.s32.f32 %v1008
        %v1011 = vcvt.s32.f32 %v1009
        %1012 = vmin.xlane.f32.xlu0 %v1011
        %v1013 = vpop.xlane.xlu0 %1012
        %vm1014 = vcmp.eq.f32.partialorder %v1011, %v1013
        %v1015 = vsel %vm1014, %v1010, inf
        %1016 = vmin.xlane.f32.xlu0 %v1015
        %v1017 = vpop.xlane.xlu0 %1016
        %v1018 = vcvt.f32.s32 %v1017
        %v1019 = vcvt.f32.s32 %v1013
        %v1020 = vshll.u32 %v1019, 16
        %v1021 = vadd.s32 %v1020, %v1018
        %v1022 = vand.u32 %v811, 65535
        %v1023 = vshra.s32 %v811, 16
        %v1024 = vcvt.s32.f32 %v1022
        %v1025 = vcvt.s32.f32 %v1023
        %1026 = vmin.xlane.f32.xlu0 %v1025
        %v1027 = vpop.xlane.xlu0 %1026
        %vm1028 = vcmp.eq.f32.partialorder %v1025, %v1027
        %v1029 = vsel %vm1028, %v1024, inf
        %1030 = vmin.xlane.f32.xlu0 %v1029
        %v1031 = vpop.xlane.xlu0 %1030
        %v1032 = vcvt.f32.s32 %v1031
        %v1033 = vcvt.f32.s32 %v1027
        %v1034 = vshll.u32 %v1033, 16
        %v1035 = vadd.s32 %v1034, %v1032
        %v1036 = vld [vmem:[%s267] sm:$0xff]
        %v1037 = vld [vmem:[%s267 + $0x8] sm:$0xff]
        %v1038 = vld [vmem:[%s267 + $0x10] sm:$0xff]
        %v1039 = vld [vmem:[%s267 + $0x18] sm:$0xff]
        %v1040 = vld [vmem:[%s267 + $0x20] sm:$0xff]
        %v1041 = vld [vmem:[%s267 + $0x28] sm:$0xff]
        %v1042 = vld [vmem:[%s267 + $0x30] sm:$0xff]
        %v1043 = vld [vmem:[%s267 + $0x38] sm:$0xff]
        %v1044 = vld [vmem:[%s267 + $0x40] sm:$0xff]
        %v1045 = vld [vmem:[%s267 + $0x48] sm:$0xff]
        %v1046 = vld [vmem:[%s267 + $0x50] sm:$0xff]
        %v1047 = vld [vmem:[%s267 + $0x58] sm:$0xff]
        %v1048 = vld [vmem:[%s267 + $0x60] sm:$0xff]
        %v1049 = vld [vmem:[%s267 + $0x68] sm:$0xff]
        %v1050 = vld [vmem:[%s267 + $0x70] sm:$0xff]
        %v1051 = vld [vmem:[%s267 + $0x78] sm:$0xff]
        %v1052 = vld [vmem:[%s272] sm:$0xff]
        %v1053 = vld [vmem:[%s272 + $0x8] sm:$0xff]
        %v1054 = vld [vmem:[%s272 + $0x10] sm:$0xff]
        %v1055 = vld [vmem:[%s272 + $0x18] sm:$0xff]
        %v1056 = vld [vmem:[%s272 + $0x20] sm:$0xff]
        %v1057 = vld [vmem:[%s272 + $0x28] sm:$0xff]
        %v1058 = vld [vmem:[%s272 + $0x30] sm:$0xff]
        %v1059 = vld [vmem:[%s272 + $0x38] sm:$0xff]
        %v1060 = vld [vmem:[%s272 + $0x40] sm:$0xff]
        %v1061 = vld [vmem:[%s272 + $0x48] sm:$0xff]
        %v1062 = vld [vmem:[%s272 + $0x50] sm:$0xff]
        %v1063 = vld [vmem:[%s272 + $0x58] sm:$0xff]
        %v1064 = vld [vmem:[%s272 + $0x60] sm:$0xff]
        %v1065 = vld [vmem:[%s272 + $0x68] sm:$0xff]
        %v1066 = vld [vmem:[%s272 + $0x70] sm:$0xff]
        %v1067 = vld [vmem:[%s272 + $0x78] sm:$0xff]
        %vm1068 = vcmp.gt.f32.partialorder %v749, %v1036
        %vm1069 = vcmp.gt.f32.partialorder %v751, %v1037
        %vm1070 = vcmp.gt.f32.partialorder %v753, %v1038
        %vm1071 = vcmp.gt.f32.partialorder %v755, %v1039
        %vm1072 = vcmp.gt.f32.partialorder %v757, %v1040
        %vm1073 = vcmp.gt.f32.partialorder %v759, %v1041
        %vm1074 = vcmp.gt.f32.partialorder %v761, %v1042
        %vm1075 = vcmp.gt.f32.partialorder %v763, %v1043
        %vm1076 = vcmp.gt.f32.partialorder %v765, %v1044
        %vm1077 = vcmp.gt.f32.partialorder %v767, %v1045
        %vm1078 = vcmp.gt.f32.partialorder %v769, %v1046
        %vm1079 = vcmp.gt.f32.partialorder %v771, %v1047
        %vm1080 = vcmp.gt.f32.partialorder %v773, %v1048
        %vm1081 = vcmp.gt.f32.partialorder %v775, %v1049
        %vm1082 = vcmp.gt.f32.partialorder %v777, %v1050
        %vm1083 = vcmp.gt.f32.partialorder %v779, %v1051
        %v1084 = vsel %vm1068, %v749, %v1036
        %v1085 = vsel %vm1069, %v751, %v1037
        %v1086 = vsel %vm1070, %v753, %v1038
        %v1087 = vsel %vm1071, %v755, %v1039
        %v1088 = vsel %vm1072, %v757, %v1040
        %v1089 = vsel %vm1073, %v759, %v1041
        %v1090 = vsel %vm1074, %v761, %v1042
        %v1091 = vsel %vm1075, %v763, %v1043
        %v1092 = vsel %vm1076, %v765, %v1044
        %v1093 = vsel %vm1077, %v767, %v1045
        %v1094 = vsel %vm1078, %v769, %v1046
        %v1095 = vsel %vm1079, %v771, %v1047
        %v1096 = vsel %vm1080, %v773, %v1048
        %v1097 = vsel %vm1081, %v775, %v1049
        %v1098 = vsel %vm1082, %v777, %v1050
        %v1099 = vsel %vm1083, %v779, %v1051
        %vm1100 = vcmask 7168
        %1101 = vst.msk [vmem:[%s267] sm:$0xff] %vm1100, %v1084
        %1102 = vst.msk [vmem:[%s267 + $0x8] sm:$0xff] %vm1100, %v1085
        %1103 = vst.msk [vmem:[%s267 + $0x10] sm:$0xff] %vm1100, %v1086
        %1104 = vst.msk [vmem:[%s267 + $0x18] sm:$0xff] %vm1100, %v1087
        %1105 = vst.msk [vmem:[%s267 + $0x20] sm:$0xff] %vm1100, %v1088
        %1106 = vst.msk [vmem:[%s267 + $0x28] sm:$0xff] %vm1100, %v1089
        %1107 = vst.msk [vmem:[%s267 + $0x30] sm:$0xff] %vm1100, %v1090
        %1108 = vst.msk [vmem:[%s267 + $0x38] sm:$0xff] %vm1100, %v1091
        %1109 = vst.msk [vmem:[%s267 + $0x40] sm:$0xff] %vm1100, %v1092
        %1110 = vst.msk [vmem:[%s267 + $0x48] sm:$0xff] %vm1100, %v1093
        %1111 = vst.msk [vmem:[%s267 + $0x50] sm:$0xff] %vm1100, %v1094
        %1112 = vst.msk [vmem:[%s267 + $0x58] sm:$0xff] %vm1100, %v1095
        %1113 = vst.msk [vmem:[%s267 + $0x60] sm:$0xff] %vm1100, %v1096
        %1114 = vst.msk [vmem:[%s267 + $0x68] sm:$0xff] %vm1100, %v1097
        %1115 = vst.msk [vmem:[%s267 + $0x70] sm:$0xff] %vm1100, %v1098
        %1116 = vst.msk [vmem:[%s267 + $0x78] sm:$0xff] %vm1100, %v1099
        %v1117 = vsel %vm1068, %v825, %v1052
        %v1118 = vsel %vm1069, %v839, %v1053
        %v1119 = vsel %vm1070, %v853, %v1054
        %v1120 = vsel %vm1071, %v867, %v1055
        %v1121 = vsel %vm1072, %v881, %v1056
        %v1122 = vsel %vm1073, %v895, %v1057
        %v1123 = vsel %vm1074, %v909, %v1058
        %v1124 = vsel %vm1075, %v923, %v1059
        %v1125 = vsel %vm1076, %v937, %v1060
        %v1126 = vsel %vm1077, %v951, %v1061
        %v1127 = vsel %vm1078, %v965, %v1062
        %v1128 = vsel %vm1079, %v979, %v1063
        %v1129 = vsel %vm1080, %v993, %v1064
        %v1130 = vsel %vm1081, %v1007, %v1065
        %v1131 = vsel %vm1082, %v1021, %v1066
        %v1132 = vsel %vm1083, %v1035, %v1067
        %1133 = vst.msk [vmem:[%s272] sm:$0xff] %vm1100, %v1117
        %1134 = vst.msk [vmem:[%s272 + $0x8] sm:$0xff] %vm1100, %v1118
        %1135 = vst.msk [vmem:[%s272 + $0x10] sm:$0xff] %vm1100, %v1119
        %1136 = vst.msk [vmem:[%s272 + $0x18] sm:$0xff] %vm1100, %v1120
        %1137 = vst.msk [vmem:[%s272 + $0x20] sm:$0xff] %vm1100, %v1121
        %1138 = vst.msk [vmem:[%s272 + $0x28] sm:$0xff] %vm1100, %v1122
        %1139 = vst.msk [vmem:[%s272 + $0x30] sm:$0xff] %vm1100, %v1123
        %1140 = vst.msk [vmem:[%s272 + $0x38] sm:$0xff] %vm1100, %v1124
        %1141 = vst.msk [vmem:[%s272 + $0x40] sm:$0xff] %vm1100, %v1125
        %1142 = vst.msk [vmem:[%s272 + $0x48] sm:$0xff] %vm1100, %v1126
        %1143 = vst.msk [vmem:[%s272 + $0x50] sm:$0xff] %vm1100, %v1127
        %1144 = vst.msk [vmem:[%s272 + $0x58] sm:$0xff] %vm1100, %v1128
        %1145 = vst.msk [vmem:[%s272 + $0x60] sm:$0xff] %vm1100, %v1129
        %1146 = vst.msk [vmem:[%s272 + $0x68] sm:$0xff] %vm1100, %v1130
        %1147 = vst.msk [vmem:[%s272 + $0x70] sm:$0xff] %vm1100, %v1131
        %1148 = vst.msk [vmem:[%s272 + $0x78] sm:$0xff] %vm1100, %v1132
        %s1149 = sand.u32 %s112, 1
        %s1150 = scalar_lea.sflag [#allocation3], %s1149
        %s1151 = sand.u32 %s112, 1
        %s1152 = smul.addr %s1151, 128
        %s1153 = scalar_lea.vmem [#allocation2], %s1152
        %p1154 = scmp.lt.s32.totalorder %s24, 1
        %s1155 = scalar_select %p1154, %s24, 1
        %s1156 = smul.addr %s1155, 16
        %s1157 = smul.addr %s1156, 8
        %s1158 = scalar_lea.vmem %s4, %s1157
        %p1159 = scmp.lt.s32.totalorder %s24, 1
        %s1160 = scalar_select %p1159, %s24, 1
        %s1161 = smul.addr %s1160, 16
        %s1162 = smul.addr %s1161, 8
        %s1163 = scalar_lea.vmem %s5, %s1162
        // Predicated region
        $region37: #{tpu_custom_call.1} parent=31 // pred_check
          %p1164 = pneg %p122
        $region38: #{tpu_custom_call.1} parent=31 // pred_check_branch
          %1166 = sbr.rel (%p1164) target = $region40
        $region39: #{tpu_custom_call.1} parent=31 // pred_region
          %s1168 = ssub.s32 2048, 2048
          %1169 = vsyncadd %s1150, %s1168
          %s1170 = smul.addr %s24, 16
          %s1171 = sadd.s32 %s25, %s1170
          %s1172 = smul.addr %s1171, 128
          %s1173 = scalar_lea.hbm %s3, %s1172
          %s1174 = sshll.u32 %s1153, 4
          %s1175 = int_to_ptr.vmem [resolvable:$true] %s1174
          %1180 = dma.vmem_to_hbm [thread:$0]  %s1175, 2048, %s1173, %s1150, 128, 128, 8
        $region40: #{tpu_custom_call.1} parent=31 // pred_fallthru
          _
        // Predicated region
        $region41: #{tpu_custom_call.1} parent=31 // pred_check
          %p1181 = pneg %p148
        $region42: #{tpu_custom_call.1} parent=31 // pred_check_branch
          %1183 = sbr.rel (%p1181) target = $region44
        $region43: #{tpu_custom_call.1} parent=31 // pred_region
          _
        $region44: #{tpu_custom_call.1} parent=31 // pred_fallthru
          _
        // Predicated region
        $region45: #{tpu_custom_call.1} parent=31 // pred_check
          %p1184 = pneg %p174
        $region46: #{tpu_custom_call.1} parent=31 // pred_check_branch
          %1186 = sbr.rel (%p1184) target = $region48
        $region47: #{tpu_custom_call.1} parent=31 // pred_region
          _
        $region48: #{tpu_custom_call.1} parent=31 // pred_fallthru
          _
      $region32: #{tpu_custom_call.1} parent=5 // pred_fallthru
        _
      %p1187 = scmp.le.s32.totalorder 2, %s15
      // Predicated region
      $region49: #{tpu_custom_call.1} parent=5 // pred_check
        %p1188 = pneg %p1187
      $region50: #{tpu_custom_call.1} parent=5 // pred_check_branch
        %1190 = sbr.rel (%p1188) target = $region52
      $region51: #{tpu_custom_call.1} parent=5 // pred_region
        %s1191 = ssub.s32 %s15, 2
        // Predicated region
        $region53: #{tpu_custom_call.1} parent=51 // pred_check
          %p1192 = pneg %p128
        $region54: #{tpu_custom_call.1} parent=51 // pred_check_branch
          %1194 = sbr.rel (%p1192) target = $region56
        $region55: #{tpu_custom_call.1} parent=51 // pred_region
          %s1195 = sand.u32 %s113, 1
          %s1196 = scalar_lea.sflag [#allocation3], %s1195
          %s1197 = sand.u32 %s113, 1
          %s1198 = smul.addr %s1197, 128
          %s1199 = scalar_lea.vmem [#allocation2], %s1198
          %1200 = dma.done %s1196, 2048
        $region56: #{tpu_custom_call.1} parent=51 // pred_fallthru
          _
        // Predicated region
        $region57: #{tpu_custom_call.1} parent=51 // pred_check
          %p1201 = pneg %p154
        $region58: #{tpu_custom_call.1} parent=51 // pred_check_branch
          %1203 = sbr.rel (%p1201) target = $region60
        $region59: #{tpu_custom_call.1} parent=51 // pred_region
          %p1204 = scmp.lt.s32.totalorder %s26, 1
          %s1205 = scalar_select %p1204, %s26, 1
          %s1206 = smul.addr %s1205, 16
          %s1207 = smul.addr %s1206, 8
          %s1208 = scalar_lea.vmem %s4, %s1207
        $region60: #{tpu_custom_call.1} parent=51 // pred_fallthru
          _
        // Predicated region
        $region61: #{tpu_custom_call.1} parent=51 // pred_check
          %p1209 = pneg %p180
        $region62: #{tpu_custom_call.1} parent=51 // pred_check_branch
          %1211 = sbr.rel (%p1209) target = $region64
        $region63: #{tpu_custom_call.1} parent=51 // pred_region
          %p1212 = scmp.lt.s32.totalorder %s26, 1
          %s1213 = scalar_select %p1212, %s26, 1
          %s1214 = smul.addr %s1213, 16
          %s1215 = smul.addr %s1214, 8
          %s1216 = scalar_lea.vmem %s5, %s1215
        $region64: #{tpu_custom_call.1} parent=51 // pred_fallthru
          _
      $region52: #{tpu_custom_call.1} parent=5 // pred_fallthru
        _
    $region6: #{tpu_custom_call.1} parent=1 // loop_footer
      %s19 = sadd.s32 1, %s15
    $region7: #{tpu_custom_call.1} parent=1 // loop_footer_branch
      %14 = sbr.rel target = $region3
    $region8: #{tpu_custom_call.1} parent=1 // loop_exit
      _
    %1217 = vsyncpa [#allocation3], 1
    %s1218 = scalar_lea.sflag [#allocation3], 1
    %1219 = vsyncpa %s1218, 1

</llo_original>
